<compile_context>
chip_gen: v6e
topology: v6e:2x2x1
jax: 0.10.0
libtpu: 0.0.40
codegen_flags: <defaults>
</compile_context>

<pallas_src>
import jax
import jax.numpy as jnp
from jax.experimental import pallas as pl
from jax.experimental.pallas import tpu as pltpu


def _round_up(x, m):
    return ((x + m - 1) // m) * m


def _pick_tile(n):
    # Larger tiles amortize the ~0.35us per-grid-step overhead; keep them
    # modest so double-buffered tiles fit v7x's 64 MiB VMEM.
    if n >= 2048:
        return 512
    if n >= 512:
        return 256
    return 128


def _vmem_limit_bytes():
    # Raise the scoped-VMEM limit above the 16/32 MiB defaults but stay well
    # inside the physical budget (128 MiB on v5e/v6e, 64 MiB per TC on v7x).
    try:
        cap = pltpu.get_tpu_info().vmem_capacity_bytes
    except Exception:
        cap = 64 * 1024 * 1024
    return min(96 * 1024 * 1024, int(cap * 3 // 4))


# --------------------------------------------------------------------------
# Kernel 1: node-tiled projection  h = X @ W,  s = h @ [a_dst | a_src]
# --------------------------------------------------------------------------
def _project_kernel(x_ref, w_ref, acat_ref, h_ref, s_ref):
    # bf16 operands on the MXU, f32 accumulation.
    h = jnp.dot(x_ref[...], w_ref[...], preferred_element_type=jnp.float32)
    h_bf = h.astype(jnp.bfloat16)
    h_ref[...] = h_bf
    # Attention score projection as one MXU matmul ([Tn,Fp] x [Fp,2]) instead
    # of two cross-lane reductions. Column 0 = dst score, column 1 = src score.
    s_ref[...] = jnp.dot(h_bf, acat_ref[...], preferred_element_type=jnp.float32)


# --------------------------------------------------------------------------
# Kernel 2: flash-attention-style GAT aggregation over (dst tile, src tile)
# --------------------------------------------------------------------------
def _stgat_flash_kernel(s_dst_ref, s_srcT_ref, h_ref, adj_ref, o_ref,
                        m_scr, l_scr, acc_scr):
    ki = pl.program_id(1)

    @pl.when(ki == 0)
    def _():
        m_scr[...] = jnp.full_like(m_scr, -1e30)
        l_scr[...] = jnp.zeros_like(l_scr)
        acc_scr[...] = jnp.zeros_like(acc_scr)

    # int8 adjacency tile -> boolean edge mask (4x less HBM than f32 adj).
    mask = adj_ref[...].astype(jnp.float32) > 0.0            # [Tq, Tk]

    # scores[i, j] = LeakyReLU_0.2( s_dst[i] + s_src[j] )
    scores = s_dst_ref[...] + s_srcT_ref[...]                 # [Tq,1]+[1,Tk]
    scores = jnp.where(scores > 0, scores, 0.2 * scores)
    scores = jnp.where(mask, scores, -1e30)

    # Online (running) softmax over the source axis.
    m_prev = m_scr[...]
    m_new = jnp.maximum(m_prev, jnp.max(scores, axis=-1, keepdims=True))
    corr = jnp.exp(m_prev - m_new)                            # [Tq, 1]
    p = jnp.where(mask, jnp.exp(scores - m_new), 0.0)         # [Tq, Tk] f32

    l_scr[...] = corr * l_scr[...] + jnp.sum(p, axis=-1, keepdims=True)
    acc_scr[...] = corr * acc_scr[...] + jnp.dot(
        p.astype(jnp.bfloat16), h_ref[...],
        preferred_element_type=jnp.float32)
    m_scr[...] = m_new

    @pl.when(ki == pl.num_programs(1) - 1)
    def _():
        l = l_scr[...]
        inv = pl.reciprocal(jnp.where(l > 0, l, 1.0), approx=True)   # EUP slot
        out = jnp.where(l > 0, acc_scr[...] * inv, 0.0)   # isolated nodes -> 0
        o_ref[...] = out.astype(o_ref.dtype)


# --------------------------------------------------------------------------
# Wrapper
# --------------------------------------------------------------------------
def stgat_conv_layer(x, edge_index, w, a_src, a_dst, edge_weight=None):
    """STGATConvLayer forward. x:[N,Fin], edge_index:[2,E] (row=dst, col=src)."""
    del edge_weight  # unused by the GAT attention path (matches PyTorch module)

    n, fin = x.shape
    fout = w.shape[1]

    tile = _pick_tile(n)
    np_ = _round_up(n, tile)              # padded node count
    fp = _round_up(fout, 128)             # lane-dense output feature dim
    vmem_limit = _vmem_limit_bytes()

    # ---- pad & cast parameters (zero padding keeps the math unchanged) ----
    xp = jnp.zeros((np_, fin), jnp.bfloat16).at[:n, :].set(x.astype(jnp.bfloat16))
    wp = jnp.zeros((fin, fp), jnp.bfloat16).at[:, :fout].set(w.astype(jnp.bfloat16))
    acat = jnp.zeros((fp, 2), jnp.bfloat16)
    acat = acat.at[:fout, 0].set(a_dst[0].astype(jnp.bfloat16))
    acat = acat.at[:fout, 1].set(a_src[0].astype(jnp.bfloat16))

    # Dense int8 adjacency [N_dst, N_src]; padded rows/cols stay 0 (masked).
    dst = edge_index[0]
    src = edge_index[1]
    adj = jnp.zeros((np_, np_), jnp.int8).at[dst, src].set(jnp.int8(1))

    # ---- kernel 1: projection ----
    h, s = pl.pallas_call(
        _project_kernel,
        out_shape=(jax.ShapeDtypeStruct((np_, fp), jnp.bfloat16),
                   jax.ShapeDtypeStruct((np_, 2), jnp.float32)),
        grid=(np_ // tile,),
        in_specs=[pl.BlockSpec((tile, fin), lambda i: (i, 0)),
                  pl.BlockSpec((fin, fp), lambda i: (0, 0)),
                  pl.BlockSpec((fp, 2), lambda i: (0, 0))],
        out_specs=[pl.BlockSpec((tile, fp), lambda i: (i, 0)),
                   pl.BlockSpec((tile, 2), lambda i: (i, 0))],
        compiler_params=pltpu.CompilerParams(
            dimension_semantics=("parallel",),
            vmem_limit_bytes=vmem_limit),
    )(xp, wp, acat)

    s_dst = s[:, 0:1]                                  # [Np, 1]
    s_srcT = jnp.reshape(s[:, 1:2], (1, np_))          # [1, Np] (row form)

    # ---- kernel 2: flash-style masked softmax + aggregation ----
    out_p = pl.pallas_call(
        _stgat_flash_kernel,
        out_shape=jax.ShapeDtypeStruct((np_, fp), jnp.float32),
        grid=(np_ // tile, np_ // tile),
        in_specs=[pl.BlockSpec((tile, 1), lambda qi, ki: (qi, 0)),
                  pl.BlockSpec((1, tile), lambda qi, ki: (0, ki)),
                  pl.BlockSpec((tile, fp), lambda qi, ki: (ki, 0)),
                  pl.BlockSpec((tile, tile), lambda qi, ki: (qi, ki))],
        out_specs=pl.BlockSpec((tile, fp), lambda qi, ki: (qi, 0)),
        scratch_shapes=[pltpu.VMEM((tile, 1), jnp.float32),
                        pltpu.VMEM((tile, 1), jnp.float32),
                        pltpu.VMEM((tile, fp), jnp.float32)],
        compiler_params=pltpu.CompilerParams(
            dimension_semantics=("parallel", "arbitrary"),
            vmem_limit_bytes=vmem_limit),
    )(s_dst, s_srcT, h, adj)

    return out_p[:n, :fout]


# --------------------------------------------------------------------------
# Pure-JAX edge-list reference (f32), mirrors the PyTorch semantics.
# --------------------------------------------------------------------------
def _reference_gat(x, edge_index, w, a_src, a_dst):
    n = x.shape[0]
    h = x @ w
    s_src = (h * a_src).sum(-1)
    s_dst = (h * a_dst).sum(-1)
    dst, src = edge_index[0], edge_index[1]
    e = s_dst[dst] + s_src[src]
    e = jnp.where(e > 0, e, 0.2 * e)                   # LeakyReLU(0.2)
    m = jnp.full((n,), -1e30, jnp.float32).at[dst].max(e)
    ex = jnp.exp(e - m[dst])
    denom = jnp.zeros((n,), jnp.float32).at[dst].add(ex)
    alpha = ex / denom[dst]
    out = jnp.zeros((n, h.shape[1]), jnp.float32).at[dst].add(alpha[:, None] * h[src])
    return out


if __name__ == "__main__":
    key = jax.random.PRNGKey(0)
    k_x, k_w, k_as, k_ad = jax.random.split(key, 4)

    num_nodes = 256          # > one tile -> exercises the (dst, src) grid
    in_channels = 8
    out_channels = 16        # nhead=1, concat=False -> output [N, out_channels]

    X = jax.random.normal(k_x, (num_nodes, in_channels), jnp.float32)
    W = jax.random.normal(k_w, (in_channels, out_channels), jnp.float32) * 0.1
    a_src = jax.random.normal(k_as, (1, out_channels), jnp.float32) * 0.1
    a_dst = jax.random.normal(k_ad, (1, out_channels), jnp.float32) * 0.1

    # Deterministic edge list: ring (both directions) + self loops.
    # edge_index[0] = destination, edge_index[1] = source (cogdl spmm order).
    dst_list, src_list = [], []
    for i in range(num_nodes):
        for j in (i, (i + 1) % num_nodes, (i - 1) % num_nodes):
            dst_list.append(i)
            src_list.append(j)
    edge_index = jnp.array([dst_list, src_list], dtype=jnp.int32)

    out = stgat_conv_layer(X, edge_index, W, a_src, a_dst)
    out = jax.block_until_ready(out)

    ref = _reference_gat(X, edge_index, W, a_src, a_dst)
    assert out.shape == (num_nodes, out_channels)
    max_err = float(jnp.max(jnp.abs(out - ref)))
    # bf16 MXU operands (f32 accumulation) -> relaxed tolerance vs f32 reference.
    assert jnp.allclose(out, ref, atol=2e-2, rtol=2e-2), (
        f"mismatch vs reference: max abs err {max_err}")

    print("KERNEL_OK")
</pallas_src>

<mosaic_0001>
module attributes {stable_mosaic.version = 11 : i64} {
  func.func @_project_kernel(%arg0: i32, %arg1: memref<128x8xbf16, #tpu.memory_space<vmem>>, %arg2: memref<8x128xbf16, #tpu.memory_space<vmem>>, %arg3: memref<128x2xbf16, #tpu.memory_space<vmem>>, %arg4: memref<128x128xbf16, #tpu.memory_space<vmem>>, %arg5: memref<128x2xf32, #tpu.memory_space<vmem>>) attributes {dimension_semantics = [#tpu.dimension_semantics<parallel>], iteration_bounds = array<i64: 2>, scalar_prefetch = 0 : i64, scratch_operands = 0 : i64, tpu.core_type = #tpu.core_type<tc>, window_params = [{transform_indices = @transform_0, window_bounds = array<i64: 128, 8>}, {pipeline_mode = #tpu.pipeline_mode<synchronous>, transform_indices = @transform_1, window_bounds = array<i64: 8, 128>}, {pipeline_mode = #tpu.pipeline_mode<synchronous>, transform_indices = @transform_2, window_bounds = array<i64: 128, 2>}, {transform_indices = @transform_3, window_bounds = array<i64: 128, 128>}, {transform_indices = @transform_4, window_bounds = array<i64: 128, 2>}]} {
    %c0 = arith.constant 0 : index
    %c0_0 = arith.constant 0 : index
    %0 = vector.load %arg1[%c0, %c0_0] : memref<128x8xbf16, #tpu.memory_space<vmem>>, vector<128x8xbf16>
    %c0_1 = arith.constant 0 : index
    %c0_2 = arith.constant 0 : index
    %1 = vector.load %arg2[%c0_1, %c0_2] : memref<8x128xbf16, #tpu.memory_space<vmem>>, vector<8x128xbf16>
    %cst = arith.constant dense<0.000000e+00> : vector<128x128xf32>
    %2 = tpu.matmul %0, %1, %cst {dimension_numbers = #tpu.dot_dimension_numbers<[1], [0], [0], [1], [0, 0, 1, 1], [], []>} : vector<128x8xbf16>, vector<8x128xbf16>, vector<128x128xf32> -> vector<128x128xf32>
    %3 = arith.truncf %2 : vector<128x128xf32> to vector<128x128xbf16>
    %c0_3 = arith.constant 0 : index
    %c0_4 = arith.constant 0 : index
    %4 = vector.load %arg4[%c0_3, %c0_4] : memref<128x128xbf16, #tpu.memory_space<vmem>>, vector<128x128xbf16>
    tpu.vector_store %arg4[%c0_3, %c0_4], %3 {strides = array<i32>} : memref<128x128xbf16, #tpu.memory_space<vmem>>, vector<128x128xbf16>,
    %c0_5 = arith.constant 0 : index
    %c0_6 = arith.constant 0 : index
    %5 = vector.load %arg3[%c0_5, %c0_6] : memref<128x2xbf16, #tpu.memory_space<vmem>>, vector<128x2xbf16>
    %cst_7 = arith.constant dense<0.000000e+00> : vector<128x2xf32>
    %6 = tpu.matmul %3, %5, %cst_7 {dimension_numbers = #tpu.dot_dimension_numbers<[1], [0], [0], [1], [0, 0, 1, 1], [], []>} : vector<128x128xbf16>, vector<128x2xbf16>, vector<128x2xf32> -> vector<128x2xf32>
    %c0_8 = arith.constant 0 : index
    %c0_9 = arith.constant 0 : index
    %7 = vector.load %arg5[%c0_8, %c0_9] : memref<128x2xf32, #tpu.memory_space<vmem>>, vector<128x2xf32>
    tpu.vector_store %arg5[%c0_8, %c0_9], %6 {strides = array<i32>} : memref<128x2xf32, #tpu.memory_space<vmem>>, vector<128x2xf32>,
    return
  }
  func.func @transform_0(%arg0: i32) -> (i32, i32) {
    %c0_i32 = arith.constant 0 : i32
    %c0_i32_0 = arith.constant 0 : i32
    return %arg0, %c0_i32 : i32, i32
  }
  func.func @transform_1(%arg0: i32) -> (i32, i32) {
    %c0_i32 = arith.constant 0 : i32
    %c0_i32_0 = arith.constant 0 : i32
    %c0_i32_1 = arith.constant 0 : i32
    return %c0_i32, %c0_i32_0 : i32, i32
  }
  func.func @transform_2(%arg0: i32) -> (i32, i32) {
    %c0_i32 = arith.constant 0 : i32
    %c0_i32_0 = arith.constant 0 : i32
    %c0_i32_1 = arith.constant 0 : i32
    return %c0_i32, %c0_i32_0 : i32, i32
  }
  func.func @transform_3(%arg0: i32) -> (i32, i32) {
    %c0_i32 = arith.constant 0 : i32
    %c0_i32_0 = arith.constant 0 : i32
    return %arg0, %c0_i32 : i32, i32
  }
  func.func @transform_4(%arg0: i32) -> (i32, i32) {
    %c0_i32 = arith.constant 0 : i32
    %c0_i32_0 = arith.constant 0 : i32
    return %arg0, %c0_i32 : i32, i32
  }
}

</mosaic_0001>

<llo_original>
// kernel: tpu_custom_call.1
$region0: #{tpu_custom_call.1}
  #allocation0 [shape = 'u32[]', space=smem, size = 0x4, offset = 0x4, fixed_abs, tag = 'smem constant byte address 0x4 - core index']
  #allocation1 [shape = 'u32[144,128]{1,0:T(1,128)}', space=vmem, size = 0x12000, scoped, tag = 'internal scratch']
  %s0 = inlined_call_operand.vmem [shape: bf16[256,8], index: 0, kind: input, shape index: {}]
  %s1 = inlined_call_operand.vmem [shape: bf16[8,128], index: 1, kind: input, shape index: {}]
  %s2 = inlined_call_operand.vmem [shape: bf16[128,2], index: 2, kind: input, shape index: {}]
  %s3 = inlined_call_operand.hbm [shape: bf16[256,128], index: 3, kind: output, shape index: {0}]
  %s4 = inlined_call_operand.vmem [shape: f32[256,2], index: 4, kind: output, shape index: {1}]
  %5 = xla_tuple %s3, %s4
  %s6 = sld [smem:[#allocation0]]
  $region53: #{tpu_custom_call.1} parent=0
    _
  %s8 = ssub.s32 1, %s6
  %s9 = scalar_select 0, %s8, %s6
  $region1: #{tpu_custom_call.1} parent=0
    #allocation2 [shape = 'u8[65536]{0}', space=vmem, size = 0x10000, scoped, tag = 'output window, operand 0']
    #allocation3 [shape = 's32[2]{0}', space=sflag, size = 0x8, scoped, tag = 'scoped memory for tpu_custom_call.1']
    %10 = vsyncpa [#allocation3], 0
    %s11 = scalar_lea.sflag [#allocation3], 1
    %12 = vsyncpa %s11, 0
    loop: start=0, step=1, limit=4
    $region2: #{tpu_custom_call.1} parent=1 // loop_pre_header
      _
    $region3: #{tpu_custom_call.1} parent=1 // loop_header
      %s14 = sphi 0, %s18
      %p15 = scmp.ge.s32.totalorder %s14, 4
      %s24 = sphi 0, %s26
      %s27 = sphi 0, %s24
      %s28 = sphi 0, %s27
      %s44 = sphi 0, %s28
      %s48 = sphi 0, %s48
      %s50 = sphi 0, %s48
      %s51 = sphi 0, %s50
      %s65 = sphi 0, %s51
      %s69 = sphi 0, %s69
      %s71 = sphi 0, %s69
      %s72 = sphi 0, %s71
      %s86 = sphi 0, %s72
      %s92 = sphi 0, %s94
      %s95 = sphi 0, %s92
      %s96 = sphi 0, %s95
      %s112 = sphi 0, %s96
      %s118 = sphi 0, %s120
      %s121 = sphi 0, %s118
      %s122 = sphi 0, %s121
      %s138 = sphi 0, %s122
    $region4: #{tpu_custom_call.1} parent=1 // loop_header_branch
      %17 = sbr.rel (%p15) target = $region8
    $region5: #{tpu_custom_call.1} parent=1 // loop_body
      %s19 = ssub.s32 %s14, 1
      %s20 = ssub.s32 %s14, 2
      %s21 = sadd.s32 %s14, 1
      %s22 = ssub.s32 %s14, %s21
      %p23 = scmp.eq.s32.totalorder %s22, 0
      %s25 = sadd.s32 %s24, 1
      %s26 = scalar_select %p23, %s24, %s25
      %p29 = pneg %p23
      %p30 = scmp.eq.s32.totalorder %s14, 1
      %p31 = por %p29, %p30
      %p32 = scmp.ne.s32.totalorder %s24, %s27
      %p33 = scmp.eq.s32.totalorder %s14, 0
      %p34 = por %p32, %p33
      %p35 = scmp.ne.s32.totalorder %s24, %s27
      %p36 = scmp.eq.s32.totalorder %s19, 1
      %p37 = por %p35, %p36
      %p38 = scmp.ne.s32.totalorder %s27, %s28
      %p39 = scmp.eq.s32.totalorder %s19, 0
      %p40 = por %p38, %p39
      %p41 = scmp.ne.s32.totalorder %s27, %s28
      %p42 = scmp.eq.s32.totalorder %s20, 1
      %p43 = por %p41, %p42
      %p45 = scmp.ne.s32.totalorder %s28, %s44
      %p46 = scmp.eq.s32.totalorder %s20, 0
      %p47 = por %p45, %p46
      %s49 = sadd.s32 %s48, 1
      %p52 = scmp.eq.s32.totalorder %s14, 1
      %p53 = scmp.ne.s32.totalorder %s48, %s50
      %p54 = scmp.eq.s32.totalorder %s14, 0
      %p55 = por %p53, %p54
      %p56 = scmp.ne.s32.totalorder %s48, %s50
      %p57 = scmp.eq.s32.totalorder %s19, 1
      %p58 = por %p56, %p57
      %p59 = scmp.ne.s32.totalorder %s50, %s51
      %p60 = scmp.eq.s32.totalorder %s19, 0
      %p61 = por %p59, %p60
      %p62 = scmp.ne.s32.totalorder %s50, %s51
      %p63 = scmp.eq.s32.totalorder %s20, 1
      %p64 = por %p62, %p63
      %p66 = scmp.ne.s32.totalorder %s51, %s65
      %p67 = scmp.eq.s32.totalorder %s20, 0
      %p68 = por %p66, %p67
      %s70 = sadd.s32 %s69, 1
      %p73 = scmp.eq.s32.totalorder %s14, 1
      %p74 = scmp.ne.s32.totalorder %s69, %s71
      %p75 = scmp.eq.s32.totalorder %s14, 0
      %p76 = por %p74, %p75
      %p77 = scmp.ne.s32.totalorder %s69, %s71
      %p78 = scmp.eq.s32.totalorder %s19, 1
      %p79 = por %p77, %p78
      %p80 = scmp.ne.s32.totalorder %s71, %s72
      %p81 = scmp.eq.s32.totalorder %s19, 0
      %p82 = por %p80, %p81
      %p83 = scmp.ne.s32.totalorder %s71, %s72
      %p84 = scmp.eq.s32.totalorder %s20, 1
      %p85 = por %p83, %p84
      %p87 = scmp.ne.s32.totalorder %s72, %s86
      %p88 = scmp.eq.s32.totalorder %s20, 0
      %p89 = por %p87, %p88
      %s90 = ssub.s32 %s14, %s21
      %p91 = scmp.eq.s32.totalorder %s90, 0
      %s93 = sadd.s32 %s92, 1
      %s94 = scalar_select %p91, %s92, %s93
      %p97 = pneg %p91
      %p98 = scmp.eq.s32.totalorder %s14, 1
      %p99 = por %p97, %p98
      %p100 = scmp.ne.s32.totalorder %s92, %s95
      %p101 = scmp.eq.s32.totalorder %s14, 0
      %p102 = por %p100, %p101
      %p103 = scmp.ne.s32.totalorder %s92, %s95
      %p104 = scmp.eq.s32.totalorder %s19, 1
      %p105 = por %p103, %p104
      %p106 = scmp.ne.s32.totalorder %s95, %s96
      %p107 = scmp.eq.s32.totalorder %s19, 0
      %p108 = por %p106, %p107
      %p109 = scmp.ne.s32.totalorder %s95, %s96
      %p110 = scmp.eq.s32.totalorder %s20, 1
      %p111 = por %p109, %p110
      %p113 = scmp.ne.s32.totalorder %s96, %s112
      %p114 = scmp.eq.s32.totalorder %s20, 0
      %p115 = por %p113, %p114
      %s116 = ssub.s32 %s14, %s21
      %p117 = scmp.eq.s32.totalorder %s116, 0
      %s119 = sadd.s32 %s118, 1
      %s120 = scalar_select %p117, %s118, %s119
      %p123 = pneg %p117
      %p124 = scmp.eq.s32.totalorder %s14, 1
      %p125 = por %p123, %p124
      %p126 = scmp.ne.s32.totalorder %s118, %s121
      %p127 = scmp.eq.s32.totalorder %s14, 0
      %p128 = por %p126, %p127
      %p129 = scmp.ne.s32.totalorder %s118, %s121
      %p130 = scmp.eq.s32.totalorder %s19, 1
      %p131 = por %p129, %p130
      %p132 = scmp.ne.s32.totalorder %s121, %s122
      %p133 = scmp.eq.s32.totalorder %s19, 0
      %p134 = por %p132, %p133
      %p135 = scmp.ne.s32.totalorder %s121, %s122
      %p136 = scmp.eq.s32.totalorder %s20, 1
      %p137 = por %p135, %p136
      %p139 = scmp.ne.s32.totalorder %s122, %s138
      %p140 = scmp.eq.s32.totalorder %s20, 0
      %p141 = por %p139, %p140
      %p142 = scmp.le.s32.totalorder 1, %s14
      %p143 = scmp.lt.s32.totalorder %s14, 3
      %p144 = pnand %p142, %p143
      %p145 = pneg %p144
      // Predicated region
      $region9: #{tpu_custom_call.1} parent=5 // pred_check
        _
      $region10: #{tpu_custom_call.1} parent=5 // pred_check_branch
        %147 = sbr.rel (%p144) target = $region12
      $region11: #{tpu_custom_call.1} parent=5 // pred_region
        %s148 = ssub.s32 %s14, 1
        // Predicated region
        $region13: #{tpu_custom_call.1} parent=11 // pred_check
          %p149 = pneg %p61
        $region14: #{tpu_custom_call.1} parent=11 // pred_check_branch
          %151 = sbr.rel (%p149) target = $region16
        $region15: #{tpu_custom_call.1} parent=11 // pred_region
          _
        $region16: #{tpu_custom_call.1} parent=11 // pred_fallthru
          _
        // Predicated region
        $region17: #{tpu_custom_call.1} parent=11 // pred_check
          %p152 = pneg %p82
        $region18: #{tpu_custom_call.1} parent=11 // pred_check_branch
          %154 = sbr.rel (%p152) target = $region20
        $region19: #{tpu_custom_call.1} parent=11 // pred_region
          _
        $region20: #{tpu_custom_call.1} parent=11 // pred_fallthru
          _
      $region12: #{tpu_custom_call.1} parent=5 // pred_fallthru
        _
      %p155 = scmp.lt.s32.totalorder %s14, 2
      // Predicated region
      $region21: #{tpu_custom_call.1} parent=5 // pred_check
        %p156 = pneg %p155
      $region22: #{tpu_custom_call.1} parent=5 // pred_check_branch
        %158 = sbr.rel (%p156) target = $region24
      $region23: #{tpu_custom_call.1} parent=5 // pred_region
        // Predicated region
        $region25: #{tpu_custom_call.1} parent=23 // pred_check
          %p159 = pneg %p34
        $region26: #{tpu_custom_call.1} parent=23 // pred_check_branch
          %161 = sbr.rel (%p159) target = $region28
        $region27: #{tpu_custom_call.1} parent=23 // pred_region
          %s162 = smul.u32 16, %s14
          %p163 = scmp.lt.s32.totalorder %s162, 31
          %s164 = scalar_select %p163, %s162, 31
          %s165 = smul.addr %s164, 4
          %s166 = scalar_lea.vmem %s0, %s165
          %s167 = smul.u32 16, %s14
        $region28: #{tpu_custom_call.1} parent=23 // pred_fallthru
          _
      $region24: #{tpu_custom_call.1} parent=5 // pred_fallthru
        _
      %p168 = scmp.le.s32.totalorder 1, %s14
      %p169 = scmp.lt.s32.totalorder %s14, 3
      %p170 = pnand %p168, %p169
      %p171 = pneg %p170
      // Predicated region
      $region29: #{tpu_custom_call.1} parent=5 // pred_check
        _
      $region30: #{tpu_custom_call.1} parent=5 // pred_check_branch
        %173 = sbr.rel (%p170) target = $region32
      $region31: #{tpu_custom_call.1} parent=5 // pred_region
        %s174 = ssub.s32 %s14, 1
        %s175 = smul.u32 16, %s19
        %p176 = scmp.lt.s32.totalorder %s175, 31
        %s177 = scalar_select %p176, %s175, 31
        %s178 = smul.addr %s177, 4
        %s179 = scalar_lea.vmem %s0, %s178
        %p180 = pneg %p40
        %p181 = pneg %p37
        %p182 = pneg %p61
        %p183 = pneg %p58
        %p184 = pneg %p82
        %p185 = pneg %p79
        %p186 = pneg %p108
        %p187 = pneg %p105
        %s188 = sand.u32 %s95, 1
        %s189 = scalar_lea.sflag [#allocation3], %s188
        %s190 = sand.u32 %s95, 1
        %s191 = smul.addr %s190, 64
        %s192 = scalar_lea.vmem [#allocation2], %s191
        %p193 = pneg %p134
        %p194 = pneg %p131
        %s195 = smul.u32 16, %s19
        %p196 = scmp.lt.s32.totalorder %s195, 31
        %s197 = scalar_select %p196, %s195, 31
        %s198 = smul.addr %s197, 8
        %s199 = scalar_lea.vmem %s4, %s198
        %s200 = smul.u32 16, %s19
        %p201 = scmp.lt.s32.totalorder %s200, 31
        %s202 = scalar_select %p201, %s200, 31
        %s203 = smul.addr %s202, 4
        %s204 = scalar_lea.vmem %s0, %s203
        %s205 = smul.u32 16, %s19
        %s206 = smul.u32 16, %s19
        %s207 = smul.u32 16, %s19
        %p208 = scmp.lt.s32.totalorder %s207, 31
        %s209 = scalar_select %p208, %s207, 31
        %s210 = smul.addr %s209, 8
        %s211 = scalar_lea.vmem %s4, %s210
        %s212 = smul.u32 16, %s19
        %v214 = vld [vmem:[%s204] sm:$0xf]
        %v215 = vld [vmem:[%s204 + $0x4] sm:$0xf]
        %v216 = vld [vmem:[%s204 + $0x8] sm:$0xf]
        %v217 = vld [vmem:[%s204 + $0xc] sm:$0xf]
        %v218 = vld [vmem:[%s204 + $0x10] sm:$0xf]
        %v219 = vld [vmem:[%s204 + $0x14] sm:$0xf]
        %v220 = vld [vmem:[%s204 + $0x18] sm:$0xf]
        %v221 = vld [vmem:[%s204 + $0x1c] sm:$0xf]
        %v222 = vld [vmem:[%s204 + $0x20] sm:$0xf]
        %v223 = vld [vmem:[%s204 + $0x24] sm:$0xf]
        %v224 = vld [vmem:[%s204 + $0x28] sm:$0xf]
        %v225 = vld [vmem:[%s204 + $0x2c] sm:$0xf]
        %v226 = vld [vmem:[%s204 + $0x30] sm:$0xf]
        %v227 = vld [vmem:[%s204 + $0x34] sm:$0xf]
        %v228 = vld [vmem:[%s204 + $0x38] sm:$0xf]
        %v229 = vld [vmem:[%s204 + $0x3c] sm:$0xf]
        %v230 = vld [vmem:[%s1] sm:$0xf]
        %v247 = vunpack.c.l.b16 %v214
        %v248 = vunpack.c.l.b16 %v215
        %v249 = vunpack.c.l.b16 %v216
        %v250 = vunpack.c.l.b16 %v217
        %v251 = vunpack.c.l.b16 %v218
        %v252 = vunpack.c.l.b16 %v219
        %v253 = vunpack.c.l.b16 %v220
        %v254 = vunpack.c.l.b16 %v221
        %v255 = vunpack.c.l.b16 %v222
        %v256 = vunpack.c.l.b16 %v223
        %v257 = vunpack.c.l.b16 %v224
        %v258 = vunpack.c.l.b16 %v225
        %v259 = vunpack.c.l.b16 %v226
        %v260 = vunpack.c.l.b16 %v227
        %v261 = vunpack.c.l.b16 %v228
        %v262 = vunpack.c.l.b16 %v229
        %v263 = vpack.c.b16 %v248, %v247
        %v264 = vpack.c.b16 %v250, %v249
        %v265 = vpack.c.b16 %v252, %v251
        %v266 = vpack.c.b16 %v254, %v253
        %v267 = vpack.c.b16 %v256, %v255
        %v268 = vpack.c.b16 %v258, %v257
        %v269 = vpack.c.b16 %v260, %v259
        %v270 = vpack.c.b16 %v262, %v261
        %vm271 = vcmask 64512
        %v273 = vsel %vm271, %v263, 0
        %v276 = vsel %vm271, %v264, 0
        %v279 = vsel %vm271, %v265, 0
        %v282 = vsel %vm271, %v266, 0
        %v285 = vsel %vm271, %v267, 0
        %v288 = vsel %vm271, %v268, 0
        %v291 = vsel %vm271, %v269, 0
        %v294 = vsel %vm271, %v270, 0
        %vm296 = vcmask 1043456
        %v298 = vsel %vm296, %v230, 0
        %300 = vmatprep.subr.bf16.mxu0 0
        %301 = vmatpush1.bf16.msra.mxu0 0
        %302 = vmatprep.subr.bf16.mxu0 0
        %303 = vmatpush1.bf16.msra.mxu0 0
        %304 = vmatprep.subr.bf16.mxu0 0
        %305 = vmatpush1.bf16.msra.mxu0 0
        %306 = vmatprep.subr.bf16.mxu0 0
        %307 = vmatpush1.bf16.msra.mxu0 0
        %308 = vmatprep.subr.bf16.mxu0 0
        %309 = vmatpush1.bf16.msra.mxu0 0
        %310 = vmatprep.subr.bf16.mxu0 0
        %311 = vmatpush1.bf16.msra.mxu0 0
        %312 = vmatprep.subr.bf16.mxu0 0
        %313 = vmatpush1.bf16.msra.mxu0 0
        %314 = vmatprep.subr.bf16.mxu0 0
        %315 = vmatpush1.bf16.msra.mxu0 %v298
        %316 = vmatprep.subr.bf16.mxu0 0
        %317 = vmatpush2.bf16.msra.mxu0 0
        %318 = vmatprep.subr.bf16.mxu0 0
        %319 = vmatpush2.bf16.msra.mxu0 0
        %320 = vmatprep.subr.bf16.mxu0 0
        %321 = vmatpush2.bf16.msra.mxu0 0
        %322 = vmatprep.subr.bf16.mxu0 0
        %323 = vmatpush2.bf16.msra.mxu0 0
        %324 = vmatprep.subr.bf16.mxu0 0
        %325 = vmatpush2.bf16.msra.mxu0 0
        %326 = vmatprep.subr.bf16.mxu0 0
        %327 = vmatpush2.bf16.msra.mxu0 0
        %328 = vmatprep.subr.bf16.mxu0 0
        %329 = vmatpush2.bf16.msra.mxu0 0
        %330 = vmatprep.subr.bf16.mxu0 0
        %331 = vmatpush2.bf16.msra.mxu0 0
        %332 = vmatprep.mubr.bf16.mxu0 0
        %333 = vmatmul.mubr.bf16.gmra.mxu0 %v273
        %v334 = vpop.f32.mrf.mxu0
        %v335 = vadd.f32 0.0, %v334
        %v336 = vpop.f32.mrf.mxu0
        %v337 = vpop.f32.mrf.mxu0
        %v338 = vadd.f32 0.0, %v337
        %v339 = vpop.f32.mrf.mxu0
        %340 = vmatprep.mubr.bf16.mxu0 0
        %341 = vmatmul.mubr.bf16.gmra.mxu0 %v276
        %v342 = vpop.f32.mrf.mxu0
        %v343 = vadd.f32 0.0, %v342
        %v344 = vpop.f32.mrf.mxu0
        %v345 = vpop.f32.mrf.mxu0
        %v346 = vadd.f32 0.0, %v345
        %v347 = vpop.f32.mrf.mxu0
        %348 = vmatprep.mubr.bf16.mxu0 0
        %349 = vmatmul.mubr.bf16.gmra.mxu0 %v279
        %v350 = vpop.f32.mrf.mxu0
        %v351 = vadd.f32 0.0, %v350
        %v352 = vpop.f32.mrf.mxu0
        %v353 = vpop.f32.mrf.mxu0
        %v354 = vadd.f32 0.0, %v353
        %v355 = vpop.f32.mrf.mxu0
        %356 = vmatprep.mubr.bf16.mxu0 0
        %357 = vmatmul.mubr.bf16.gmra.mxu0 %v282
        %v358 = vpop.f32.mrf.mxu0
        %v359 = vadd.f32 0.0, %v358
        %v360 = vpop.f32.mrf.mxu0
        %v361 = vpop.f32.mrf.mxu0
        %v362 = vadd.f32 0.0, %v361
        %v363 = vpop.f32.mrf.mxu0
        %364 = vmatprep.mubr.bf16.mxu0 0
        %365 = vmatmul.mubr.bf16.gmra.mxu0 %v285
        %v366 = vpop.f32.mrf.mxu0
        %v367 = vadd.f32 0.0, %v366
        %v368 = vpop.f32.mrf.mxu0
        %v369 = vpop.f32.mrf.mxu0
        %v370 = vadd.f32 0.0, %v369
        %v371 = vpop.f32.mrf.mxu0
        %372 = vmatprep.mubr.bf16.mxu0 0
        %373 = vmatmul.mubr.bf16.gmra.mxu0 %v288
        %v374 = vpop.f32.mrf.mxu0
        %v375 = vadd.f32 0.0, %v374
        %v376 = vpop.f32.mrf.mxu0
        %v377 = vpop.f32.mrf.mxu0
        %v378 = vadd.f32 0.0, %v377
        %v379 = vpop.f32.mrf.mxu0
        %380 = vmatprep.mubr.bf16.mxu0 0
        %381 = vmatmul.mubr.bf16.gmra.mxu0 %v291
        %v382 = vpop.f32.mrf.mxu0
        %v383 = vadd.f32 0.0, %v382
        %v384 = vpop.f32.mrf.mxu0
        %v385 = vpop.f32.mrf.mxu0
        %v386 = vadd.f32 0.0, %v385
        %v387 = vpop.f32.mrf.mxu0
        %388 = vmatprep.mubr.bf16.mxu0 0
        %389 = vmatmul.mubr.bf16.gmra.mxu0 %v294
        %v390 = vpop.f32.mrf.mxu0
        %v391 = vadd.f32 0.0, %v390
        %v392 = vpop.f32.mrf.mxu0
        %v393 = vpop.f32.mrf.mxu0
        %v394 = vadd.f32 0.0, %v393
        %v395 = vpop.f32.mrf.mxu0
        %396 = vdwg.mxu0
        %v397 = vpack.c.bf16 %v338, %v335
        %v398 = vpack.c.bf16 %v346, %v343
        %v399 = vpack.c.bf16 %v354, %v351
        %v400 = vpack.c.bf16 %v362, %v359
        %v401 = vpack.c.bf16 %v370, %v367
        %v402 = vpack.c.bf16 %v378, %v375
        %v403 = vpack.c.bf16 %v386, %v383
        %v404 = vpack.c.bf16 %v394, %v391
        %v413 = vunpack.c.l.b16 %v397
        %v414 = vunpack.c.h.b16 %v397
        %v415 = vunpack.c.l.b16 %v398
        %v416 = vunpack.c.h.b16 %v398
        %v417 = vunpack.c.l.b16 %v399
        %v418 = vunpack.c.h.b16 %v399
        %v419 = vunpack.c.l.b16 %v400
        %v420 = vunpack.c.h.b16 %v400
        %v421 = vunpack.c.l.b16 %v401
        %v422 = vunpack.c.h.b16 %v401
        %v423 = vunpack.c.l.b16 %v402
        %v424 = vunpack.c.h.b16 %v402
        %v425 = vunpack.c.l.b16 %v403
        %v426 = vunpack.c.h.b16 %v403
        %v427 = vunpack.c.l.b16 %v404
        %v428 = vunpack.c.h.b16 %v404
        %v429 = vpack.c.b16 %v413, %v413
        %v430 = vpack.c.b16 %v414, %v414
        %v431 = vpack.c.b16 %v415, %v415
        %v432 = vpack.c.b16 %v416, %v416
        %v433 = vpack.c.b16 %v417, %v417
        %v434 = vpack.c.b16 %v418, %v418
        %v435 = vpack.c.b16 %v419, %v419
        %v436 = vpack.c.b16 %v420, %v420
        %v437 = vpack.c.b16 %v421, %v421
        %v438 = vpack.c.b16 %v422, %v422
        %v439 = vpack.c.b16 %v423, %v423
        %v440 = vpack.c.b16 %v424, %v424
        %v441 = vpack.c.b16 %v425, %v425
        %v442 = vpack.c.b16 %v426, %v426
        %v443 = vpack.c.b16 %v427, %v427
        %v444 = vpack.c.b16 %v428, %v428
        %461 = vst [vmem:[%s192] sm:$0xf] %v429
        %462 = vst [vmem:[%s192 + $0x4] sm:$0xf] %v430
        %463 = vst [vmem:[%s192 + $0x8] sm:$0xf] %v431
        %464 = vst [vmem:[%s192 + $0xc] sm:$0xf] %v432
        %465 = vst [vmem:[%s192 + $0x10] sm:$0xf] %v433
        %466 = vst [vmem:[%s192 + $0x14] sm:$0xf] %v434
        %467 = vst [vmem:[%s192 + $0x18] sm:$0xf] %v435
        %468 = vst [vmem:[%s192 + $0x1c] sm:$0xf] %v436
        %469 = vst [vmem:[%s192 + $0x20] sm:$0xf] %v437
        %470 = vst [vmem:[%s192 + $0x24] sm:$0xf] %v438
        %471 = vst [vmem:[%s192 + $0x28] sm:$0xf] %v439
        %472 = vst [vmem:[%s192 + $0x2c] sm:$0xf] %v440
        %473 = vst [vmem:[%s192 + $0x30] sm:$0xf] %v441
        %474 = vst [vmem:[%s192 + $0x34] sm:$0xf] %v442
        %475 = vst [vmem:[%s192 + $0x38] sm:$0xf] %v443
        %476 = vst [vmem:[%s192 + $0x3c] sm:$0xf] %v444
        %v477 = vld [vmem:[%s2] sm:$0xf]
        %v478 = vld [vmem:[%s2 + $0x4] sm:$0xf]
        %v479 = vld [vmem:[%s2 + $0x8] sm:$0xf]
        %v480 = vld [vmem:[%s2 + $0xc] sm:$0xf]
        %v481 = vld [vmem:[%s2 + $0x10] sm:$0xf]
        %v482 = vld [vmem:[%s2 + $0x14] sm:$0xf]
        %v483 = vld [vmem:[%s2 + $0x18] sm:$0xf]
        %v484 = vld [vmem:[%s2 + $0x1c] sm:$0xf]
        %v485 = vld [vmem:[%s2 + $0x20] sm:$0xf]
        %v486 = vld [vmem:[%s2 + $0x24] sm:$0xf]
        %v487 = vld [vmem:[%s2 + $0x28] sm:$0xf]
        %v488 = vld [vmem:[%s2 + $0x2c] sm:$0xf]
        %v489 = vld [vmem:[%s2 + $0x30] sm:$0xf]
        %v490 = vld [vmem:[%s2 + $0x34] sm:$0xf]
        %v491 = vld [vmem:[%s2 + $0x38] sm:$0xf]
        %v492 = vld [vmem:[%s2 + $0x3c] sm:$0xf]
        %v509 = vunpack.c.l.b16 %v477
        %v510 = vunpack.c.l.b16 %v478
        %v511 = vunpack.c.l.b16 %v479
        %v512 = vunpack.c.l.b16 %v480
        %v513 = vunpack.c.l.b16 %v481
        %v514 = vunpack.c.l.b16 %v482
        %v515 = vunpack.c.l.b16 %v483
        %v516 = vunpack.c.l.b16 %v484
        %v517 = vunpack.c.l.b16 %v485
        %v518 = vunpack.c.l.b16 %v486
        %v519 = vunpack.c.l.b16 %v487
        %v520 = vunpack.c.l.b16 %v488
        %v521 = vunpack.c.l.b16 %v489
        %v522 = vunpack.c.l.b16 %v490
        %v523 = vunpack.c.l.b16 %v491
        %v524 = vunpack.c.l.b16 %v492
        %v525 = vpack.c.b16 %v510, %v509
        %v526 = vpack.c.b16 %v512, %v511
        %v527 = vpack.c.b16 %v514, %v513
        %v528 = vpack.c.b16 %v516, %v515
        %v529 = vpack.c.b16 %v518, %v517
        %v530 = vpack.c.b16 %v520, %v519
        %v531 = vpack.c.b16 %v522, %v521
        %v532 = vpack.c.b16 %v524, %v523
        %541 = vmatprep.subr.bf16.mxu0 0
        %542 = vmatpush1.bf16.msra.mxu0 %v532
        %543 = vmatprep.subr.bf16.mxu0 0
        %544 = vmatpush1.bf16.msra.mxu0 %v531
        %545 = vmatprep.subr.bf16.mxu0 0
        %546 = vmatpush1.bf16.msra.mxu0 %v530
        %547 = vmatprep.subr.bf16.mxu0 0
        %548 = vmatpush1.bf16.msra.mxu0 %v529
        %549 = vmatprep.subr.bf16.mxu0 0
        %550 = vmatpush1.bf16.msra.mxu0 %v528
        %551 = vmatprep.subr.bf16.mxu0 0
        %552 = vmatpush1.bf16.msra.mxu0 %v527
        %553 = vmatprep.subr.bf16.mxu0 0
        %554 = vmatpush1.bf16.msra.mxu0 %v526
        %555 = vmatprep.subr.bf16.mxu0 0
        %556 = vmatpush1.bf16.msra.mxu0 %v525
        %557 = vmatprep.subr.bf16.mxu0 0
        %558 = vmatpush2.bf16.msra.mxu0 0
        %559 = vmatprep.subr.bf16.mxu0 0
        %560 = vmatpush2.bf16.msra.mxu0 0
        %561 = vmatprep.subr.bf16.mxu0 0
        %562 = vmatpush2.bf16.msra.mxu0 0
        %563 = vmatprep.subr.bf16.mxu0 0
        %564 = vmatpush2.bf16.msra.mxu0 0
        %565 = vmatprep.subr.bf16.mxu0 0
        %566 = vmatpush2.bf16.msra.mxu0 0
        %567 = vmatprep.subr.bf16.mxu0 0
        %568 = vmatpush2.bf16.msra.mxu0 0
        %569 = vmatprep.subr.bf16.mxu0 0
        %570 = vmatpush2.bf16.msra.mxu0 0
        %571 = vmatprep.subr.bf16.mxu0 0
        %572 = vmatpush2.bf16.msra.mxu0 0
        %573 = vmatprep.mubr.bf16.mxu0 0
        %574 = vmatmul.mubr.bf16.gmra.mxu0 %v397
        %v575 = vpop.f32.mrf.mxu0
        %v576 = vadd.f32 0.0, %v575
        %v577 = vpop.f32.mrf.mxu0
        %v578 = vpop.f32.mrf.mxu0
        %v579 = vadd.f32 0.0, %v578
        %v580 = vpop.f32.mrf.mxu0
        %581 = vmatprep.mubr.bf16.mxu0 0
        %582 = vmatmul.mubr.bf16.gmra.mxu0 %v398
        %v583 = vpop.f32.mrf.mxu0
        %v584 = vadd.f32 0.0, %v583
        %v585 = vpop.f32.mrf.mxu0
        %v586 = vpop.f32.mrf.mxu0
        %v587 = vadd.f32 0.0, %v586
        %v588 = vpop.f32.mrf.mxu0
        %589 = vmatprep.mubr.bf16.mxu0 0
        %590 = vmatmul.mubr.bf16.gmra.mxu0 %v399
        %v591 = vpop.f32.mrf.mxu0
        %v592 = vadd.f32 0.0, %v591
        %v593 = vpop.f32.mrf.mxu0
        %v594 = vpop.f32.mrf.mxu0
        %v595 = vadd.f32 0.0, %v594
        %v596 = vpop.f32.mrf.mxu0
        %597 = vmatprep.mubr.bf16.mxu0 0
        %598 = vmatmul.mubr.bf16.gmra.mxu0 %v400
        %v599 = vpop.f32.mrf.mxu0
        %v600 = vadd.f32 0.0, %v599
        %v601 = vpop.f32.mrf.mxu0
        %v602 = vpop.f32.mrf.mxu0
        %v603 = vadd.f32 0.0, %v602
        %v604 = vpop.f32.mrf.mxu0
        %605 = vmatprep.mubr.bf16.mxu0 0
        %606 = vmatmul.mubr.bf16.gmra.mxu0 %v401
        %v607 = vpop.f32.mrf.mxu0
        %v608 = vadd.f32 0.0, %v607
        %v609 = vpop.f32.mrf.mxu0
        %v610 = vpop.f32.mrf.mxu0
        %v611 = vadd.f32 0.0, %v610
        %v612 = vpop.f32.mrf.mxu0
        %613 = vmatprep.mubr.bf16.mxu0 0
        %614 = vmatmul.mubr.bf16.gmra.mxu0 %v402
        %v615 = vpop.f32.mrf.mxu0
        %v616 = vadd.f32 0.0, %v615
        %v617 = vpop.f32.mrf.mxu0
        %v618 = vpop.f32.mrf.mxu0
        %v619 = vadd.f32 0.0, %v618
        %v620 = vpop.f32.mrf.mxu0
        %621 = vmatprep.mubr.bf16.mxu0 0
        %622 = vmatmul.mubr.bf16.gmra.mxu0 %v403
        %v623 = vpop.f32.mrf.mxu0
        %v624 = vadd.f32 0.0, %v623
        %v625 = vpop.f32.mrf.mxu0
        %v626 = vpop.f32.mrf.mxu0
        %v627 = vadd.f32 0.0, %v626
        %v628 = vpop.f32.mrf.mxu0
        %629 = vmatprep.mubr.bf16.mxu0 0
        %630 = vmatmul.mubr.bf16.gmra.mxu0 %v404
        %v631 = vpop.f32.mrf.mxu0
        %v632 = vadd.f32 0.0, %v631
        %v633 = vpop.f32.mrf.mxu0
        %v634 = vpop.f32.mrf.mxu0
        %v635 = vadd.f32 0.0, %v634
        %v636 = vpop.f32.mrf.mxu0
        %637 = vdwg.mxu0
        %vm638 = vcmask 15360
        %639 = vst.msk [vmem:[%s211] sm:$0xff] %vm638, %v576
        %640 = vst.msk [vmem:[%s211 + $0x8] sm:$0xff] %vm638, %v579
        %641 = vst.msk [vmem:[%s211 + $0x10] sm:$0xff] %vm638, %v584
        %642 = vst.msk [vmem:[%s211 + $0x18] sm:$0xff] %vm638, %v587
        %643 = vst.msk [vmem:[%s211 + $0x20] sm:$0xff] %vm638, %v592
        %644 = vst.msk [vmem:[%s211 + $0x28] sm:$0xff] %vm638, %v595
        %645 = vst.msk [vmem:[%s211 + $0x30] sm:$0xff] %vm638, %v600
        %646 = vst.msk [vmem:[%s211 + $0x38] sm:$0xff] %vm638, %v603
        %647 = vst.msk [vmem:[%s211 + $0x40] sm:$0xff] %vm638, %v608
        %648 = vst.msk [vmem:[%s211 + $0x48] sm:$0xff] %vm638, %v611
        %649 = vst.msk [vmem:[%s211 + $0x50] sm:$0xff] %vm638, %v616
        %650 = vst.msk [vmem:[%s211 + $0x58] sm:$0xff] %vm638, %v619
        %651 = vst.msk [vmem:[%s211 + $0x60] sm:$0xff] %vm638, %v624
        %652 = vst.msk [vmem:[%s211 + $0x68] sm:$0xff] %vm638, %v627
        %653 = vst.msk [vmem:[%s211 + $0x70] sm:$0xff] %vm638, %v632
        %654 = vst.msk [vmem:[%s211 + $0x78] sm:$0xff] %vm638, %v635
        %s655 = sand.u32 %s95, 1
        %s656 = scalar_lea.sflag [#allocation3], %s655
        %s657 = sand.u32 %s95, 1
        %s658 = smul.addr %s657, 64
        %s659 = scalar_lea.vmem [#allocation2], %s658
        %s660 = smul.u32 16, %s19
        %p661 = scmp.lt.s32.totalorder %s660, 31
        %s662 = scalar_select %p661, %s660, 31
        %s663 = smul.addr %s662, 8
        %s664 = scalar_lea.vmem %s4, %s663
        // Predicated region
        $region33: #{tpu_custom_call.1} parent=31 // pred_check
          %p665 = pneg %p105
        $region34: #{tpu_custom_call.1} parent=31 // pred_check_branch
          %667 = sbr.rel (%p665) target = $region36
        $region35: #{tpu_custom_call.1} parent=31 // pred_region
          %s668 = smul.u32 16, %s19
          %s670 = ssub.s32 1024, 1024
          %671 = vsyncadd %s656, %s670
          %s672 = smul.addr %s668, 64
          %s673 = scalar_lea.hbm %s3, %s672
          %s674 = sshll.u32 %s659, 4
          %s675 = int_to_ptr.vmem [resolvable:$true] %s674
          %680 = dma.vmem_to_hbm [thread:$0]  %s675, 1024, %s673, %s656, 64, 64, 4
        $region36: #{tpu_custom_call.1} parent=31 // pred_fallthru
          _
        // Predicated region
        $region37: #{tpu_custom_call.1} parent=31 // pred_check
          %p681 = pneg %p131
        $region38: #{tpu_custom_call.1} parent=31 // pred_check_branch
          %683 = sbr.rel (%p681) target = $region40
        $region39: #{tpu_custom_call.1} parent=31 // pred_region
          %s684 = smul.u32 16, %s19
        $region40: #{tpu_custom_call.1} parent=31 // pred_fallthru
          _
      $region32: #{tpu_custom_call.1} parent=5 // pred_fallthru
        _
      %p685 = scmp.le.s32.totalorder 2, %s14
      // Predicated region
      $region41: #{tpu_custom_call.1} parent=5 // pred_check
        %p686 = pneg %p685
      $region42: #{tpu_custom_call.1} parent=5 // pred_check_branch
        %688 = sbr.rel (%p686) target = $region44
      $region43: #{tpu_custom_call.1} parent=5 // pred_region
        %s689 = ssub.s32 %s14, 2
        // Predicated region
        $region45: #{tpu_custom_call.1} parent=43 // pred_check
          %p690 = pneg %p111
        $region46: #{tpu_custom_call.1} parent=43 // pred_check_branch
          %692 = sbr.rel (%p690) target = $region48
        $region47: #{tpu_custom_call.1} parent=43 // pred_region
          %s693 = sand.u32 %s96, 1
          %s694 = scalar_lea.sflag [#allocation3], %s693
          %s695 = sand.u32 %s96, 1
          %s696 = smul.addr %s695, 64
          %s697 = scalar_lea.vmem [#allocation2], %s696
          %698 = dma.done %s694, 1024
        $region48: #{tpu_custom_call.1} parent=43 // pred_fallthru
          _
        // Predicated region
        $region49: #{tpu_custom_call.1} parent=43 // pred_check
          %p699 = pneg %p137
        $region50: #{tpu_custom_call.1} parent=43 // pred_check_branch
          %701 = sbr.rel (%p699) target = $region52
        $region51: #{tpu_custom_call.1} parent=43 // pred_region
          %s702 = smul.u32 16, %s20
          %p703 = scmp.lt.s32.totalorder %s702, 31
          %s704 = scalar_select %p703, %s702, 31
          %s705 = smul.addr %s704, 8
          %s706 = scalar_lea.vmem %s4, %s705
        $region52: #{tpu_custom_call.1} parent=43 // pred_fallthru
          _
      $region44: #{tpu_custom_call.1} parent=5 // pred_fallthru
        _
    $region6: #{tpu_custom_call.1} parent=1 // loop_footer
      %s18 = sadd.s32 1, %s14
    $region7: #{tpu_custom_call.1} parent=1 // loop_footer_branch
      %13 = sbr.rel target = $region3
    $region8: #{tpu_custom_call.1} parent=1 // loop_exit
      _
    %707 = vsyncpa [#allocation3], 1
    %s708 = scalar_lea.sflag [#allocation3], 1
    %709 = vsyncpa %s708, 1

</llo_original>
